<compile_context>
chip_gen: v6e
topology: v6e:2x2x1
jax: 0.10.0
libtpu: 0.0.40
codegen_flags: <defaults>
</compile_context>

<pallas_src>
import functools

import jax
import jax.numpy as jnp
from jax.experimental import pallas as pl
from jax.experimental.pallas import tpu as pltpu

_MIN_LANES = 128


def _round_up(x: int, m: int) -> int:
    return ((x + m - 1) // m) * m


def _round_down(x: int, m: int) -> int:
    return (x // m) * m


def _clamp(x, max_val):
    # Cast bounds to the input dtype so float/bf16 inputs keep their dtype
    # (matches torch.clamp(x, min=0, max=max_val) for float activations, incl. NaN).
    lo = jnp.asarray(0, dtype=x.dtype)
    hi = jnp.asarray(max_val, dtype=x.dtype)
    return jnp.minimum(jnp.maximum(x, lo), hi)


def _make_relumax_kernel(max_val):
    def kernel(x_ref, o_ref):
        o_ref[...] = _clamp(x_ref[...], max_val)

    return kernel


@functools.lru_cache(maxsize=1)
def _gen_config():
    """(block_bytes, fast_path_bytes, vmem_cap_bytes, tensorcores_per_chip)."""
    try:
        kind = jax.devices()[0].device_kind.lower()
    except Exception:  # pragma: no cover - defensive
        kind = ""
    if "v7" in kind:
        # 3.2 TB/s HBM, but only 64 MiB physical VMEM per TC and 2 TCs/chip:
        # 8 MiB blocks (4 resident = 32 MiB) + headroom, capped well below 64 MiB.
        return (8 << 20, 1 << 20, 48 << 20, 2)
    if "v5" in kind:
        # ~0.8 TB/s HBM: 2 MiB blocks amortize the per-step overhead to a few %.
        return (2 << 20, 256 << 10, 64 << 20, 1)
    if "v6" in kind:
        return (4 << 20, 512 << 10, 64 << 20, 1)
    return (4 << 20, 512 << 10, 64 << 20, 1)


def relu_max(x: jnp.ndarray, max_val: float, *, block_bytes: int | None = None,
             force_pallas: bool = False, in_place: bool = False) -> jnp.ndarray:
    """Elementwise clamp(x, 0, max_val) on TPU via Pallas."""
    orig_shape = x.shape
    dtype = x.dtype
    itemsize = jnp.dtype(dtype).itemsize
    n = x.size
    if n == 0:
        return x

    gen_block_bytes, fast_bytes, vmem_cap, num_cores = _gen_config()
    if block_bytes is None:
        block_bytes = gen_block_bytes

    # Fast path: small activations fuse into neighbouring XLA ops for free, and a
    # fused clamp is already at the 1-read + 1-write HBM roofline.
    if not force_pallas and n * itemsize < fast_bytes:
        return _clamp(x, max_val)

    flat = x.reshape(-1)

    # The 128-aligned prefix goes through the Pallas kernel; the (<128-element) ragged
    # tail is clamped with plain jnp.  No full-array jnp.pad / out[:n] slice (each of
    # those costs an extra HBM read+write pass of the whole tensor).
    n_main = n - (n % _MIN_LANES)
    if n_main == 0:
        return _clamp(x, max_val)
    main = flat if n_main == n else flat[:n_main]

    # Lane-dense slab: widest 128-multiple lane width that divides the prefix.
    lanes = _MIN_LANES
    for w in (1024, 512, 256):
        if n_main % w == 0:
            lanes = w
            break
    rows = n_main // lanes

    # Sublane alignment of the block's second-to-last dim: 8 f32 / 16 bf16 / 32 int8.
    sub_align = max(8, 32 // itemsize)

    # Byte-budgeted tile height (dtype-aware).
    tile = max(sub_align, _round_down(block_bytes // (lanes * itemsize), sub_align))
    if rows <= tile:
        tile = rows  # single full-extent block (exempt from sublane alignment)
    grid_n = pl.cdiv(rows, tile)

    # v7x only (2 TensorCores/chip): make the block count even so the "parallel" grid
    # axis splits evenly across both cores.  Single-TC chips (v5e/v6e) gain nothing
    # from extra splits (the grid is a serial loop there), so leave them alone.
    # TODO(synk): confirm dimension_semantics=("parallel",) core-shards a 1-D grid on
    # v7x; if not, switch to pltpu.CORE_PARALLEL / pl.core_map.
    if num_cores > 1 and n_main * itemsize >= (1 << 20):
        if grid_n == 1 and rows >= 2 * sub_align:
            tile = max(sub_align, _round_up(pl.cdiv(rows, 2), sub_align))
            grid_n = pl.cdiv(rows, tile)
        if grid_n > 1 and grid_n % 2 == 1:
            for target in range(grid_n + 1, grid_n + 9, 2):
                cand = max(sub_align, _round_up(pl.cdiv(rows, target), sub_align))
                if pl.cdiv(rows, cand) % 2 == 0:
                    tile, grid_n = cand, pl.cdiv(rows, cand)
                    break

    # VMEM budget: double-buffered input + output blocks, plus headroom; never fight
    # v7x's 64 MiB physical ceiling.
    real_block_bytes = tile * lanes * itemsize
    vmem_limit = int(min(max(4 * real_block_bytes + (8 << 20), 16 << 20), vmem_cap))

    x2d = main.reshape(rows, lanes)
    extra = {"input_output_aliases": {0: 0}} if in_place else {}
    out2d = pl.pallas_call(
        _make_relumax_kernel(float(max_val)),
        out_shape=jax.ShapeDtypeStruct((rows, lanes), dtype),
        grid=(grid_n,),
        in_specs=[pl.BlockSpec((tile, lanes), lambda i: (i, 0))],
        out_specs=pl.BlockSpec((tile, lanes), lambda i: (i, 0)),
        compiler_params=pltpu.CompilerParams(
            dimension_semantics=("parallel",),
            vmem_limit_bytes=vmem_limit,
        ),
        **extra,
    )(x2d)

    out_main = out2d.reshape(-1)
    if n_main == n:
        return out_main.reshape(orig_shape)
    tail_out = _clamp(flat[n_main:], max_val)
    return jnp.concatenate([out_main, tail_out]).reshape(orig_shape)


class ReLUMax:
    """JAX/Pallas equivalent of micromind's ReLUMax module."""

    def __init__(self, max):
        self.max = float(max)

    def __call__(self, x):
        return relu_max(x, self.max)


if __name__ == "__main__":
    root = jax.random.PRNGKey(0)
    k1, k2, k3, k4, k5 = jax.random.split(root, 5)

    # 1) Primary: NCHW conv activation (small, 128-aligned element count) through the
    #    Pallas path (small inputs would otherwise take the fused fast path).
    x = jax.random.normal(k1, (2, 4, 16, 16), dtype=jnp.float32) * 10.0
    ref = jnp.clip(x, 0.0, 6.0)
    y = jax.block_until_ready(relu_max(x, 6.0, force_pallas=True))
    assert y.shape == x.shape and y.dtype == x.dtype
    assert jnp.allclose(y, ref), "mismatch vs reference clamp (pallas path)"

    # 2) Ragged element count: Pallas on the 128-aligned prefix, jnp on the tail.
    x2 = jax.random.normal(k2, (2, 3, 7, 5), dtype=jnp.float32) * 10.0
    y2 = jax.block_until_ready(relu_max(x2, 6.0, force_pallas=True))
    assert jnp.allclose(y2, jnp.clip(x2, 0.0, 6.0)), "mismatch on ragged shape"

    # 3) Multi-block grid (small block_bytes override forces several grid steps).
    x3 = jax.random.normal(k3, (4, 8, 32, 32), dtype=jnp.float32) * 10.0
    y3 = jax.block_until_ready(relu_max(x3, 6.0, force_pallas=True, block_bytes=16 << 10))
    assert jnp.allclose(y3, jnp.clip(x3, 0.0, 6.0)), "mismatch on multi-block grid"

    # 4) bf16 path (dtype-aware sublane alignment / byte-budgeted tile).
    x4 = (jax.random.normal(k4, (4, 8, 32, 32), dtype=jnp.float32) * 10.0).astype(jnp.bfloat16)
    y4 = jax.block_until_ready(relu_max(x4, 6.0, force_pallas=True, block_bytes=16 << 10))
    assert y4.dtype == jnp.bfloat16
    assert jnp.allclose(y4.astype(jnp.float32),
                        jnp.clip(x4.astype(jnp.float32), 0.0, 6.0)), "mismatch on bf16 path"

    # 5) In-place variant: donated input aliased to the output (no second HBM buffer).
    x5 = jax.random.normal(k5, (2, 4, 16, 16), dtype=jnp.float32) * 10.0
    ref5 = jnp.clip(x5, 0.0, 6.0)
    clamp_inplace = jax.jit(
        lambda a: relu_max(a, 6.0, force_pallas=True, in_place=True), donate_argnums=0)
    y5 = jax.block_until_ready(clamp_inplace(x5))
    assert jnp.allclose(y5, ref5), "mismatch vs reference clamp (in-place path)"

    # 6) Module-level call (small input -> fused fast path, same semantics).
    module = ReLUMax(max=6.0)  # ReLU6-style clamp, as used in PhiNet
    y6 = jax.block_until_ready(module(x))
    assert jnp.allclose(y6, ref), "mismatch vs reference clamp (module fast path)"

    print("KERNEL_OK")
</pallas_src>

<mosaic_0001>
module attributes {stable_mosaic.version = 11 : i64} {
  func.func @kernel(%arg0: i32, %arg1: memref<2x1024xf32, #tpu.memory_space<vmem>>, %arg2: memref<2x1024xf32, #tpu.memory_space<vmem>>) attributes {dimension_semantics = [#tpu.dimension_semantics<parallel>], iteration_bounds = array<i64: 1>, scalar_prefetch = 0 : i64, scratch_operands = 0 : i64, tpu.core_type = #tpu.core_type<tc>, window_params = [{transform_indices = @transform_0, window_bounds = array<i64: 2, 1024>}, {transform_indices = @transform_1, window_bounds = array<i64: 2, 1024>}]} {
    %c0 = arith.constant 0 : index
    %c0_0 = arith.constant 0 : index
    %0 = vector.load %arg1[%c0, %c0_0] : memref<2x1024xf32, #tpu.memory_space<vmem>>, vector<2x1024xf32>
    %cst = arith.constant 0.000000e+00 : f32
    %1 = vector.broadcast %cst : f32 to vector<2x1024xf32>
    %2 = arith.maximumf %0, %1 : vector<2x1024xf32>
    %cst_1 = arith.constant 6.000000e+00 : f32
    %3 = vector.broadcast %cst_1 : f32 to vector<2x1024xf32>
    %4 = arith.minimumf %2, %3 : vector<2x1024xf32>
    %c0_2 = arith.constant 0 : index
    %c0_3 = arith.constant 0 : index
    %5 = vector.load %arg2[%c0_2, %c0_3] : memref<2x1024xf32, #tpu.memory_space<vmem>>, vector<2x1024xf32>
    tpu.vector_store %arg2[%c0_2, %c0_3], %4 {strides = array<i32>} : memref<2x1024xf32, #tpu.memory_space<vmem>>, vector<2x1024xf32>,
    return
  }
  func.func @transform_0(%arg0: i32) -> (i32, i32) {
    %c0_i32 = arith.constant 0 : i32
    %c0_i32_0 = arith.constant 0 : i32
    return %arg0, %c0_i32 : i32, i32
  }
  func.func @transform_1(%arg0: i32) -> (i32, i32) {
    %c0_i32 = arith.constant 0 : i32
    %c0_i32_0 = arith.constant 0 : i32
    return %arg0, %c0_i32 : i32, i32
  }
}

</mosaic_0001>

<llo_original>
// kernel: tpu_custom_call.1
$region0: #{tpu_custom_call.1}
  #allocation0 [shape = 'u32[]', space=smem, size = 0x4, offset = 0x4, fixed_abs, tag = 'smem constant byte address 0x4 - core index']
  #allocation1 [shape = 'u32[144,128]{1,0:T(1,128)}', space=vmem, size = 0x12000, scoped, tag = 'internal scratch']
  %s0 = inlined_call_operand.hbm [shape: f32[2,1024], index: 0, kind: input, shape index: {}]
  %s1 = inlined_call_operand.hbm [shape: f32[2,1024], index: 1, kind: output, shape index: {}]
  %s2 = sld [smem:[#allocation0]]
  $region18: #{tpu_custom_call.1} parent=0
    _
  %s4 = ssub.s32 1, %s2
  %s5 = scalar_select 0, %s4, %s2
  $region1: #{tpu_custom_call.1} parent=0
    #allocation2 [shape = 'u8[8192]{0}', space=vmem, size = 0x2000, scoped, tag = 'input window, operand 0, single buffered']
    #allocation3 [shape = 's32[1]{0}', space=sflag, size = 0x4, scoped, tag = 'scoped memory for tpu_custom_call.1']
    #allocation4 [shape = 's32[1]{0}', space=sflag, size = 0x4, scoped, tag = 'scoped memory for tpu_custom_call.1']
    #allocation5 [shape = 'u8[8192]{0}', space=vmem, size = 0x2000, scoped, tag = 'output window, operand 0, single buffered']
    %6 = vsyncpa [#allocation3], 0
    %7 = vsyncpa [#allocation4], 0
    // Predicated region
    $region2: #{tpu_custom_call.1} parent=1 // pred_check
      _
    $region3: #{tpu_custom_call.1} parent=1 // pred_check_branch
      %9 = sbr.rel (0) target = $region5
    $region4: #{tpu_custom_call.1} parent=1 // pred_region
      %s11 = ssub.s32 256, 256
      %12 = vsyncadd [#allocation3], %s11
      %s14 = sshll.u32 [#allocation2], 4
      %s15 = int_to_ptr.vmem [resolvable:$true] %s14
      %17 = dma.hbm_to_vmem [thread:$0]  %s0, 256, %s15, [#allocation3]
    $region5: #{tpu_custom_call.1} parent=1 // pred_fallthru
      _
    // Predicated region
    $region6: #{tpu_custom_call.1} parent=1 // pred_check
      _
    $region7: #{tpu_custom_call.1} parent=1 // pred_check_branch
      %19 = sbr.rel (0) target = $region9
    $region8: #{tpu_custom_call.1} parent=1 // pred_region
      %20 = dma.done [#allocation3], 256
    $region9: #{tpu_custom_call.1} parent=1 // pred_fallthru
      _
    %v21 = vld [vmem:[#allocation2] sm:$0xff]
    %v22 = vld [vmem:[#allocation2 + $0x8] sm:$0xff]
    %v23 = vmax.f32 %v21, 0.0
    %v24 = vmax.f32 %v22, 0.0
    %v25 = vmin.f32 %v23, 6.0
    %v26 = vmin.f32 %v24, 6.0
    %27 = vst [vmem:[#allocation5] sm:$0xff] %v25
    %28 = vst [vmem:[#allocation5 + $0x8] sm:$0xff] %v26
    // Predicated region
    $region10: #{tpu_custom_call.1} parent=1 // pred_check
      _
    $region11: #{tpu_custom_call.1} parent=1 // pred_check_branch
      %30 = sbr.rel (0) target = $region13
    $region12: #{tpu_custom_call.1} parent=1 // pred_region
      %s32 = ssub.s32 256, 256
      %33 = vsyncadd [#allocation4], %s32
      %s35 = sshll.u32 [#allocation5], 4
      %s36 = int_to_ptr.vmem [resolvable:$true] %s35
      %38 = dma.vmem_to_hbm [thread:$0]  %s36, 256, %s1, [#allocation4]
    $region13: #{tpu_custom_call.1} parent=1 // pred_fallthru
      _
    // Predicated region
    $region14: #{tpu_custom_call.1} parent=1 // pred_check
      _
    $region15: #{tpu_custom_call.1} parent=1 // pred_check_branch
      %40 = sbr.rel (0) target = $region17
    $region16: #{tpu_custom_call.1} parent=1 // pred_region
      %41 = dma.done [#allocation4], 256
    $region17: #{tpu_custom_call.1} parent=1 // pred_fallthru
      _
    %42 = vsyncpa [#allocation3], 1
    %43 = vsyncpa [#allocation4], 1

</llo_original>
